<compile_context>
chip_gen: v6e
topology: v6e:2x2x1
jax: 0.10.0
libtpu: 0.0.40
codegen_flags: <defaults>
</compile_context>

<pallas_src>
import functools

import jax
import jax.numpy as jnp
from jax.experimental import pallas as pl
from jax.experimental.pallas import tpu as pltpu

LOG_STD_MIN = -20.0
LOG_STD_MAX = 2.0
NEG_SLOPE = 0.01          # F.leaky_relu default
HEAD_LANES = 128          # lane-dense fused head width (mu | log_std | zero pad)
TB_GRAN = 256             # batch-tile granularity when tiling (v6e/v7x MXU M)


def _round_up(x, m):
    return ((x + m - 1) // m) * m


def _nbytes(a):
    return int(a.size) * int(a.dtype.itemsize)


def _leaky_relu(x):
    # equivalent to where(x > 0, x, slope*x) for slope in (0, 1); cheaper on VPU
    return jnp.maximum(x, NEG_SLOPE * x)


def policy_kernel(x_ref,
                  w1_ref, b1_ref,
                  w2_ref, b2_ref,
                  w3_ref, b3_ref,
                  wh_ref, bh_ref,
                  out_ref, *, action_dim):
    cdt = w1_ref.dtype  # MXU operand dtype (f32 or bf16); accumulation stays f32

    h = x_ref[...].astype(cdt)
    h = jnp.dot(h, w1_ref[...], preferred_element_type=jnp.float32) + b1_ref[...]
    h = _leaky_relu(h).astype(cdt)
    h = jnp.dot(h, w2_ref[...], preferred_element_type=jnp.float32) + b2_ref[...]
    h = _leaky_relu(h).astype(cdt)
    h = jnp.dot(h, w3_ref[...], preferred_element_type=jnp.float32) + b3_ref[...]
    h = _leaky_relu(h).astype(cdt)

    # Fused, lane-padded head: [mu | log_std | 0-pad] -> one matmul, one bias
    # add, one full-lane (tb, 128) store.
    head = jnp.dot(h, wh_ref[...], preferred_element_type=jnp.float32) + bh_ref[...]

    # Clamp only lanes >= action_dim (log_std half + dead pad lanes, which are
    # zero and sliced off in the wrapper); mu lanes pass through untouched.
    col = jax.lax.broadcasted_iota(jnp.int32, head.shape, 1)
    clipped = jnp.clip(head, LOG_STD_MIN, LOG_STD_MAX)
    out_ref[...] = jnp.where(col >= action_dim, clipped, head).astype(out_ref.dtype)


def prepare_params(params, *, weights_dtype=jnp.float32):
    """Fuse mu/std heads, zero-pad the head to HEAD_LANES output lanes and the
    state dimension to a multiple of 128, optionally cast weights to bf16 for
    MXU-native matmuls (biases stay f32)."""
    action_dim = params["wmu"].shape[1]
    state_dim = params["w1"].shape[0]
    sdp = _round_up(state_dim, 128)

    w1 = jnp.pad(params["w1"], ((0, sdp - state_dim), (0, 0)))

    wh = jnp.concatenate([params["wmu"], params["wstd"]], axis=1)
    bh = jnp.concatenate([params["bmu"], params["bstd"]], axis=1)
    two_a = wh.shape[1]
    assert two_a <= HEAD_LANES, "action_dim too large for single 128-lane head"
    wh = jnp.pad(wh, ((0, 0), (0, HEAD_LANES - two_a)))
    bh = jnp.pad(bh, ((0, 0), (0, HEAD_LANES - two_a)))

    wd = weights_dtype
    return dict(
        w1=w1.astype(wd), b1=params["b1"],
        w2=params["w2"].astype(wd), b2=params["b2"],
        w3=params["w3"].astype(wd), b3=params["b3"],
        wh=wh.astype(wd), bh=bh,
        action_dim=int(action_dim), state_dim=int(state_dim))


def _choose_tile(B, tb_max):
    """Single grid step for small batches; otherwise multiples of 256 with at
    least 2 (ideally even) grid steps so both v7x TensorCores get work."""
    Bp8 = _round_up(B, 8)
    if Bp8 <= tb_max:
        return Bp8, Bp8                                   # grid = (1,)
    half = _round_up((Bp8 + 1) // 2, TB_GRAN)             # >= 2 grid steps
    tb = max(TB_GRAN, min(_round_up(tb_max, TB_GRAN), half))
    return tb, _round_up(Bp8, tb)


def policy_forward(x, fused, *, tb_max=1024):
    """x: (B, state_dim) float32; fused = prepare_params(init_params(...)).
    Returns (mu, log_std), each (B, action_dim) float32."""
    B, state_dim = x.shape
    assert state_dim == fused["state_dim"]
    action_dim = fused["action_dim"]
    sdp = fused["w1"].shape[0]

    tb, Bp = _choose_tile(B, tb_max)
    if Bp != B or sdp != state_dim:
        x = jnp.pad(x, ((0, Bp - B), (0, sdp - state_dim)))
    grid = (Bp // tb,)

    def const_spec(arr):
        # Full-array block, constant block index -> fetched once, VMEM-resident.
        return pl.BlockSpec(arr.shape, lambda i: (0, 0))

    in_specs = [
        pl.BlockSpec((tb, sdp), lambda i: (i, 0)),        # x: batch-tiled, lane-full
        const_spec(fused["w1"]), const_spec(fused["b1"]),
        const_spec(fused["w2"]), const_spec(fused["b2"]),
        const_spec(fused["w3"]), const_spec(fused["b3"]),
        const_spec(fused["wh"]), const_spec(fused["bh"]),
    ]
    out_spec = pl.BlockSpec((tb, HEAD_LANES), lambda i: (i, 0))

    h1 = fused["w1"].shape[1]
    h2 = fused["w2"].shape[1]
    h3 = fused["w3"].shape[1]
    flops = 2 * Bp * (sdp * h1 + h1 * h2 + h2 * h3 + h3 * HEAD_LANES)
    param_bytes = sum(_nbytes(fused[k]) for k in
                      ("w1", "b1", "w2", "b2", "w3", "b3", "wh", "bh"))
    bytes_accessed = 4 * Bp * sdp + param_bytes + 4 * Bp * HEAD_LANES

    out = pl.pallas_call(
        functools.partial(policy_kernel, action_dim=action_dim),
        out_shape=jax.ShapeDtypeStruct((Bp, HEAD_LANES), jnp.float32),
        grid=grid,
        in_specs=in_specs,
        out_specs=out_spec,
        compiler_params=pltpu.CompilerParams(
            dimension_semantics=("parallel",)),   # v7x: shard batch across 2 TCs
        cost_estimate=pl.CostEstimate(
            flops=flops, transcendentals=0, bytes_accessed=bytes_accessed),
    )(x, fused["w1"], fused["b1"], fused["w2"], fused["b2"],
      fused["w3"], fused["b3"], fused["wh"], fused["bh"])

    mu = out[:B, :action_dim]
    log_std = out[:B, action_dim:2 * action_dim]
    return mu, log_std


def init_params(key, state_dim, action_dim):
    """nn.Linear-style init U(-1/sqrt(fan_in), 1/sqrt(fan_in)).
    Weights stored transposed (in, out); biases (1, out)."""
    def linear(k, fan_in, fan_out):
        kw, kb = jax.random.split(k)
        bound = 1.0 / jnp.sqrt(float(fan_in))
        w = jax.random.uniform(kw, (fan_in, fan_out), jnp.float32, -bound, bound)
        b = jax.random.uniform(kb, (1, fan_out), jnp.float32, -bound, bound)
        return w, b

    k1, k2, k3, k4, k5 = jax.random.split(key, 5)
    w1, b1 = linear(k1, state_dim, 128)
    w2, b2 = linear(k2, 128, 128)
    w3, b3 = linear(k3, 128, 64)
    wmu, bmu = linear(k4, 64, action_dim)
    wstd, bstd = linear(k5, 64, action_dim)
    return dict(w1=w1, b1=b1, w2=w2, b2=b2, w3=w3, b3=b3,
                wmu=wmu, bmu=bmu, wstd=wstd, bstd=bstd)


def reference_forward(x, p):
    def lrelu(v):
        return jnp.where(v > 0, v, NEG_SLOPE * v)
    h = lrelu(x @ p["w1"] + p["b1"])
    h = lrelu(h @ p["w2"] + p["b2"])
    h = lrelu(h @ p["w3"] + p["b3"])
    mu = h @ p["wmu"] + p["bmu"]
    log_std = jnp.clip(h @ p["wstd"] + p["bstd"], LOG_STD_MIN, LOG_STD_MAX)
    return mu, log_std


# TODO(synk): sample() (Normal rsample + tanh squash + log_prob) and the Adam
# optimizer are not part of forward(); only forward() is implemented here.

if __name__ == "__main__":
    key = jax.random.PRNGKey(0)
    k_params, k_x = jax.random.split(key)

    B = 8           # batch
    state_dim = 16  # state vector length
    action_dim = 2  # matches max_action/min_action of length 2

    params = init_params(k_params, state_dim, action_dim)
    x = jax.random.normal(k_x, (B, state_dim), jnp.float32)

    # --- f32 path, single grid step (tight tolerance vs plain-JAX reference) ---
    fused = prepare_params(params)                    # f32 weights
    mu, log_std = policy_forward(x, fused)
    mu = jax.block_until_ready(mu)
    log_std = jax.block_until_ready(log_std)

    mu_ref, ls_ref = reference_forward(x, params)
    assert mu.shape == (B, action_dim) and log_std.shape == (B, action_dim)
    assert jnp.allclose(mu, mu_ref, atol=1e-5, rtol=1e-5), "mu mismatch"
    assert jnp.allclose(log_std, ls_ref, atol=1e-5, rtol=1e-5), "log_std mismatch"

    # --- large batch: multi-step grid (256-multiple tiles, batch padding) ---
    Bb = 1300
    xb = jax.random.normal(jax.random.PRNGKey(1), (Bb, state_dim), jnp.float32)
    mu_b, ls_b = policy_forward(xb, fused, tb_max=1024)
    mu_b = jax.block_until_ready(mu_b)
    mu_b_ref, ls_b_ref = reference_forward(xb, params)
    assert mu_b.shape == (Bb, action_dim)
    assert jnp.allclose(mu_b, mu_b_ref, atol=1e-5, rtol=1e-5), "batched mu mismatch"
    assert jnp.allclose(ls_b, ls_b_ref, atol=1e-5, rtol=1e-5), "batched log_std mismatch"

    # --- bf16 MXU-operand path (loose tolerance vs f32 reference) ---
    fused_bf16 = prepare_params(params, weights_dtype=jnp.bfloat16)
    mu_h, ls_h = policy_forward(x, fused_bf16)
    mu_h = jax.block_until_ready(mu_h)
    assert jnp.allclose(mu_h, mu_ref, atol=1e-1, rtol=1e-1), "bf16 mu mismatch"
    assert jnp.allclose(ls_h, ls_ref, atol=1e-1, rtol=1e-1), "bf16 log_std mismatch"

    print("KERNEL_OK")
</pallas_src>

<mosaic_0001>
module attributes {stable_mosaic.version = 11 : i64} {
  func.func @policy_kernel(%arg0: i32, %arg1: memref<8x128xf32, #tpu.memory_space<vmem>>, %arg2: memref<128x128xf32, #tpu.memory_space<vmem>>, %arg3: memref<1x128xf32, #tpu.memory_space<vmem>>, %arg4: memref<128x128xf32, #tpu.memory_space<vmem>>, %arg5: memref<1x128xf32, #tpu.memory_space<vmem>>, %arg6: memref<128x64xf32, #tpu.memory_space<vmem>>, %arg7: memref<1x64xf32, #tpu.memory_space<vmem>>, %arg8: memref<64x128xf32, #tpu.memory_space<vmem>>, %arg9: memref<1x128xf32, #tpu.memory_space<vmem>>, %arg10: memref<8x128xf32, #tpu.memory_space<vmem>>) attributes {dimension_semantics = [#tpu.dimension_semantics<parallel>], iteration_bounds = array<i64: 1>, scalar_prefetch = 0 : i64, scratch_operands = 0 : i64, tpu.core_type = #tpu.core_type<tc>, window_params = [{transform_indices = @transform_0, window_bounds = array<i64: 8, 128>}, {pipeline_mode = #tpu.pipeline_mode<synchronous>, transform_indices = @transform_1, window_bounds = array<i64: 128, 128>}, {pipeline_mode = #tpu.pipeline_mode<synchronous>, transform_indices = @transform_2, window_bounds = array<i64: 1, 128>}, {pipeline_mode = #tpu.pipeline_mode<synchronous>, transform_indices = @transform_3, window_bounds = array<i64: 128, 128>}, {pipeline_mode = #tpu.pipeline_mode<synchronous>, transform_indices = @transform_4, window_bounds = array<i64: 1, 128>}, {pipeline_mode = #tpu.pipeline_mode<synchronous>, transform_indices = @transform_5, window_bounds = array<i64: 128, 64>}, {pipeline_mode = #tpu.pipeline_mode<synchronous>, transform_indices = @transform_6, window_bounds = array<i64: 1, 64>}, {pipeline_mode = #tpu.pipeline_mode<synchronous>, transform_indices = @transform_7, window_bounds = array<i64: 64, 128>}, {pipeline_mode = #tpu.pipeline_mode<synchronous>, transform_indices = @transform_8, window_bounds = array<i64: 1, 128>}, {transform_indices = @transform_9, window_bounds = array<i64: 8, 128>}]} {
    %c0 = arith.constant 0 : index
    %c0_0 = arith.constant 0 : index
    %0 = vector.load %arg1[%c0, %c0_0] : memref<8x128xf32, #tpu.memory_space<vmem>>, vector<8x128xf32>
    %c0_1 = arith.constant 0 : index
    %c0_2 = arith.constant 0 : index
    %1 = vector.load %arg2[%c0_1, %c0_2] : memref<128x128xf32, #tpu.memory_space<vmem>>, vector<128x128xf32>
    %cst = arith.constant dense<0.000000e+00> : vector<8x128xf32>
    %2 = tpu.matmul %0, %1, %cst {dimension_numbers = #tpu.dot_dimension_numbers<[1], [0], [0], [1], [0, 0, 1, 1], [], []>} : vector<8x128xf32>, vector<128x128xf32>, vector<8x128xf32> -> vector<8x128xf32>
    %c0_3 = arith.constant 0 : index
    %c0_4 = arith.constant 0 : index
    %3 = vector.load %arg3[%c0_3, %c0_4] : memref<1x128xf32, #tpu.memory_space<vmem>>, vector<1x128xf32>
    %4 = vector.broadcast %3 : vector<1x128xf32> to vector<8x128xf32>
    %5 = arith.addf %2, %4 : vector<8x128xf32>
    %cst_5 = arith.constant 0.00999999977 : f32
    %6 = vector.broadcast %cst_5 : f32 to vector<8x128xf32>
    %7 = arith.mulf %6, %5 : vector<8x128xf32>
    %8 = arith.maximumf %5, %7 : vector<8x128xf32>
    %c0_6 = arith.constant 0 : index
    %c0_7 = arith.constant 0 : index
    %9 = vector.load %arg4[%c0_6, %c0_7] : memref<128x128xf32, #tpu.memory_space<vmem>>, vector<128x128xf32>
    %cst_8 = arith.constant dense<0.000000e+00> : vector<8x128xf32>
    %10 = tpu.matmul %8, %9, %cst_8 {dimension_numbers = #tpu.dot_dimension_numbers<[1], [0], [0], [1], [0, 0, 1, 1], [], []>} : vector<8x128xf32>, vector<128x128xf32>, vector<8x128xf32> -> vector<8x128xf32>
    %c0_9 = arith.constant 0 : index
    %c0_10 = arith.constant 0 : index
    %11 = vector.load %arg5[%c0_9, %c0_10] : memref<1x128xf32, #tpu.memory_space<vmem>>, vector<1x128xf32>
    %12 = vector.broadcast %11 : vector<1x128xf32> to vector<8x128xf32>
    %13 = arith.addf %10, %12 : vector<8x128xf32>
    %cst_11 = arith.constant 0.00999999977 : f32
    %14 = vector.broadcast %cst_11 : f32 to vector<8x128xf32>
    %15 = arith.mulf %14, %13 : vector<8x128xf32>
    %16 = arith.maximumf %13, %15 : vector<8x128xf32>
    %c0_12 = arith.constant 0 : index
    %c0_13 = arith.constant 0 : index
    %17 = vector.load %arg6[%c0_12, %c0_13] : memref<128x64xf32, #tpu.memory_space<vmem>>, vector<128x64xf32>
    %cst_14 = arith.constant dense<0.000000e+00> : vector<8x64xf32>
    %18 = tpu.matmul %16, %17, %cst_14 {dimension_numbers = #tpu.dot_dimension_numbers<[1], [0], [0], [1], [0, 0, 1, 1], [], []>} : vector<8x128xf32>, vector<128x64xf32>, vector<8x64xf32> -> vector<8x64xf32>
    %c0_15 = arith.constant 0 : index
    %c0_16 = arith.constant 0 : index
    %19 = vector.load %arg7[%c0_15, %c0_16] : memref<1x64xf32, #tpu.memory_space<vmem>>, vector<1x64xf32>
    %20 = vector.broadcast %19 : vector<1x64xf32> to vector<8x64xf32>
    %21 = arith.addf %18, %20 : vector<8x64xf32>
    %cst_17 = arith.constant 0.00999999977 : f32
    %22 = vector.broadcast %cst_17 : f32 to vector<8x64xf32>
    %23 = arith.mulf %22, %21 : vector<8x64xf32>
    %24 = arith.maximumf %21, %23 : vector<8x64xf32>
    %c0_18 = arith.constant 0 : index
    %c0_19 = arith.constant 0 : index
    %25 = vector.load %arg8[%c0_18, %c0_19] : memref<64x128xf32, #tpu.memory_space<vmem>>, vector<64x128xf32>
    %cst_20 = arith.constant dense<0.000000e+00> : vector<8x128xf32>
    %26 = tpu.matmul %24, %25, %cst_20 {dimension_numbers = #tpu.dot_dimension_numbers<[1], [0], [0], [1], [0, 0, 1, 1], [], []>} : vector<8x64xf32>, vector<64x128xf32>, vector<8x128xf32> -> vector<8x128xf32>
    %c0_21 = arith.constant 0 : index
    %c0_22 = arith.constant 0 : index
    %27 = vector.load %arg9[%c0_21, %c0_22] : memref<1x128xf32, #tpu.memory_space<vmem>>, vector<1x128xf32>
    %28 = vector.broadcast %27 : vector<1x128xf32> to vector<8x128xf32>
    %29 = arith.addf %26, %28 : vector<8x128xf32>
    %30 = tpu.iota {dimensions = array<i32: 1>} : vector<8x128xi32>
    %cst_23 = arith.constant -2.000000e+01 : f32
    %cst_24 = arith.constant 2.000000e+00 : f32
    %31 = vector.broadcast %cst_23 : f32 to vector<8x128xf32>
    %32 = arith.maximumf %31, %29 : vector<8x128xf32>
    %33 = vector.broadcast %cst_24 : f32 to vector<8x128xf32>
    %34 = arith.minimumf %33, %32 : vector<8x128xf32>
    %c2_i32 = arith.constant 2 : i32
    %35 = vector.broadcast %c2_i32 : i32 to vector<8x128xi32>
    %36 = arith.cmpi sge, %30, %35 : vector<8x128xi32>
    %37 = arith.select %36, %34, %29 : vector<8x128xi1>, vector<8x128xf32>
    %c0_25 = arith.constant 0 : index
    %c0_26 = arith.constant 0 : index
    %38 = vector.load %arg10[%c0_25, %c0_26] : memref<8x128xf32, #tpu.memory_space<vmem>>, vector<8x128xf32>
    tpu.vector_store %arg10[%c0_25, %c0_26], %37 {strides = array<i32>} : memref<8x128xf32, #tpu.memory_space<vmem>>, vector<8x128xf32>,
    return
  }
  func.func @transform_0(%arg0: i32) -> (i32, i32) {
    %c0_i32 = arith.constant 0 : i32
    %c0_i32_0 = arith.constant 0 : i32
    return %arg0, %c0_i32 : i32, i32
  }
  func.func @transform_1(%arg0: i32) -> (i32, i32) {
    %c0_i32 = arith.constant 0 : i32
    %c0_i32_0 = arith.constant 0 : i32
    %c0_i32_1 = arith.constant 0 : i32
    return %c0_i32, %c0_i32_0 : i32, i32
  }
  func.func @transform_2(%arg0: i32) -> (i32, i32) {
    %c0_i32 = arith.constant 0 : i32
    %c0_i32_0 = arith.constant 0 : i32
    %c0_i32_1 = arith.constant 0 : i32
    return %c0_i32, %c0_i32_0 : i32, i32
  }
  func.func @transform_3(%arg0: i32) -> (i32, i32) {
    %c0_i32 = arith.constant 0 : i32
    %c0_i32_0 = arith.constant 0 : i32
    %c0_i32_1 = arith.constant 0 : i32
    return %c0_i32, %c0_i32_0 : i32, i32
  }
  func.func @transform_4(%arg0: i32) -> (i32, i32) {
    %c0_i32 = arith.constant 0 : i32
    %c0_i32_0 = arith.constant 0 : i32
    %c0_i32_1 = arith.constant 0 : i32
    return %c0_i32, %c0_i32_0 : i32, i32
  }
  func.func @transform_5(%arg0: i32) -> (i32, i32) {
    %c0_i32 = arith.constant 0 : i32
    %c0_i32_0 = arith.constant 0 : i32
    %c0_i32_1 = arith.constant 0 : i32
    return %c0_i32, %c0_i32_0 : i32, i32
  }
  func.func @transform_6(%arg0: i32) -> (i32, i32) {
    %c0_i32 = arith.constant 0 : i32
    %c0_i32_0 = arith.constant 0 : i32
    %c0_i32_1 = arith.constant 0 : i32
    return %c0_i32, %c0_i32_0 : i32, i32
  }
  func.func @transform_7(%arg0: i32) -> (i32, i32) {
    %c0_i32 = arith.constant 0 : i32
    %c0_i32_0 = arith.constant 0 : i32
    %c0_i32_1 = arith.constant 0 : i32
    return %c0_i32, %c0_i32_0 : i32, i32
  }
  func.func @transform_8(%arg0: i32) -> (i32, i32) {
    %c0_i32 = arith.constant 0 : i32
    %c0_i32_0 = arith.constant 0 : i32
    %c0_i32_1 = arith.constant 0 : i32
    return %c0_i32, %c0_i32_0 : i32, i32
  }
  func.func @transform_9(%arg0: i32) -> (i32, i32) {
    %c0_i32 = arith.constant 0 : i32
    %c0_i32_0 = arith.constant 0 : i32
    return %arg0, %c0_i32 : i32, i32
  }
}

</mosaic_0001>

<llo_original>
// kernel: tpu_custom_call.1
$region0: #{tpu_custom_call.1}
  #allocation0 [shape = 'u32[]', space=smem, size = 0x4, offset = 0x4, fixed_abs, tag = 'smem constant byte address 0x4 - core index']
  #allocation1 [shape = 'u32[144,128]{1,0:T(1,128)}', space=vmem, size = 0x12000, scoped, tag = 'internal scratch']
  %s0 = inlined_call_operand.hbm [shape: f32[8,128], index: 0, kind: input, shape index: {}]
  %s1 = inlined_call_operand.vmem [shape: f32[128,128], index: 1, kind: input, shape index: {}]
  %s2 = inlined_call_operand.vmem [shape: f32[1,128], index: 2, kind: input, shape index: {}]
  %s3 = inlined_call_operand.hbm [shape: f32[128,128], index: 3, kind: input, shape index: {}]
  %s4 = inlined_call_operand.vmem [shape: f32[1,128], index: 4, kind: input, shape index: {}]
  %s5 = inlined_call_operand.vmem [shape: f32[128,64], index: 5, kind: input, shape index: {}]
  %s6 = inlined_call_operand.vmem [shape: f32[1,64], index: 6, kind: input, shape index: {}]
  %s7 = inlined_call_operand.vmem [shape: f32[64,128], index: 7, kind: input, shape index: {}]
  %s8 = inlined_call_operand.vmem [shape: f32[1,128], index: 8, kind: input, shape index: {}]
  %s9 = inlined_call_operand.hbm [shape: f32[8,128], index: 9, kind: output, shape index: {}]
  %s10 = sld [smem:[#allocation0]]
  $region54: #{tpu_custom_call.1} parent=0
    _
  %s12 = ssub.s32 1, %s10
  %s13 = scalar_select 0, %s12, %s10
  $region1: #{tpu_custom_call.1} parent=0
    #allocation2 [shape = 'u8[4096]{0}', space=vmem, size = 0x1000, scoped, tag = 'input window, operand 0, single buffered']
    #allocation3 [shape = 's32[1]{0}', space=sflag, size = 0x4, scoped, tag = 'scoped memory for tpu_custom_call.1']
    #allocation4 [shape = 's32[1]{0}', space=sflag, size = 0x4, scoped, tag = 'scoped memory for tpu_custom_call.1']
    #allocation5 [shape = 'u8[65536]{0}', space=vmem, size = 0x10000, scoped, tag = 'input window, operand 3, single buffered']
    #allocation6 [shape = 's32[1]{0}', space=sflag, size = 0x4, scoped, tag = 'scoped memory for tpu_custom_call.1']
    #allocation7 [shape = 'u8[4096]{0}', space=vmem, size = 0x1000, scoped, tag = 'output window, operand 0, single buffered']
    %14 = vsyncpa [#allocation3], 0
    %15 = vsyncpa [#allocation6], 0
    %16 = vsyncpa [#allocation4], 0
    // Predicated region
    $region2: #{tpu_custom_call.1} parent=1 // pred_check
      _
    $region3: #{tpu_custom_call.1} parent=1 // pred_check_branch
      %18 = sbr.rel (0) target = $region5
    $region4: #{tpu_custom_call.1} parent=1 // pred_region
      %s20 = ssub.s32 128, 128
      %21 = vsyncadd [#allocation3], %s20
      %s23 = sshll.u32 [#allocation2], 4
      %s24 = int_to_ptr.vmem [resolvable:$true] %s23
      %26 = dma.hbm_to_vmem [thread:$0]  %s0, 128, %s24, [#allocation3]
    $region5: #{tpu_custom_call.1} parent=1 // pred_fallthru
      _
    // Predicated region
    $region6: #{tpu_custom_call.1} parent=1 // pred_check
      _
    $region7: #{tpu_custom_call.1} parent=1 // pred_check_branch
      %28 = sbr.rel (0) target = $region9
    $region8: #{tpu_custom_call.1} parent=1 // pred_region
      _
    $region9: #{tpu_custom_call.1} parent=1 // pred_fallthru
      _
    // Predicated region
    $region10: #{tpu_custom_call.1} parent=1 // pred_check
      _
    $region11: #{tpu_custom_call.1} parent=1 // pred_check_branch
      %30 = sbr.rel (0) target = $region13
    $region12: #{tpu_custom_call.1} parent=1 // pred_region
      _
    $region13: #{tpu_custom_call.1} parent=1 // pred_fallthru
      _
    // Predicated region
    $region14: #{tpu_custom_call.1} parent=1 // pred_check
      _
    $region15: #{tpu_custom_call.1} parent=1 // pred_check_branch
      %32 = sbr.rel (0) target = $region17
    $region16: #{tpu_custom_call.1} parent=1 // pred_region
      %s34 = ssub.s32 2048, 2048
      %35 = vsyncadd [#allocation6], %s34
      %s36 = sshll.u32 [#allocation5], 4
      %s37 = int_to_ptr.vmem [resolvable:$true] %s36
      %42 = dma.hbm_to_vmem [thread:$0]  %s3, 2048, %s37, [#allocation6], 128, 128, 8
    $region17: #{tpu_custom_call.1} parent=1 // pred_fallthru
      _
    // Predicated region
    $region18: #{tpu_custom_call.1} parent=1 // pred_check
      _
    $region19: #{tpu_custom_call.1} parent=1 // pred_check_branch
      %44 = sbr.rel (0) target = $region21
    $region20: #{tpu_custom_call.1} parent=1 // pred_region
      _
    $region21: #{tpu_custom_call.1} parent=1 // pred_fallthru
      _
    // Predicated region
    $region22: #{tpu_custom_call.1} parent=1 // pred_check
      _
    $region23: #{tpu_custom_call.1} parent=1 // pred_check_branch
      %46 = sbr.rel (0) target = $region25
    $region24: #{tpu_custom_call.1} parent=1 // pred_region
      _
    $region25: #{tpu_custom_call.1} parent=1 // pred_fallthru
      _
    // Predicated region
    $region26: #{tpu_custom_call.1} parent=1 // pred_check
      _
    $region27: #{tpu_custom_call.1} parent=1 // pred_check_branch
      %48 = sbr.rel (0) target = $region29
    $region28: #{tpu_custom_call.1} parent=1 // pred_region
      _
    $region29: #{tpu_custom_call.1} parent=1 // pred_fallthru
      _
    // Predicated region
    $region30: #{tpu_custom_call.1} parent=1 // pred_check
      _
    $region31: #{tpu_custom_call.1} parent=1 // pred_check_branch
      %50 = sbr.rel (0) target = $region33
    $region32: #{tpu_custom_call.1} parent=1 // pred_region
      _
    $region33: #{tpu_custom_call.1} parent=1 // pred_fallthru
      _
    // Predicated region
    $region34: #{tpu_custom_call.1} parent=1 // pred_check
      _
    $region35: #{tpu_custom_call.1} parent=1 // pred_check_branch
      %52 = sbr.rel (0) target = $region37
    $region36: #{tpu_custom_call.1} parent=1 // pred_region
      _
    $region37: #{tpu_custom_call.1} parent=1 // pred_fallthru
      _
    // Predicated region
    $region38: #{tpu_custom_call.1} parent=1 // pred_check
      _
    $region39: #{tpu_custom_call.1} parent=1 // pred_check_branch
      %54 = sbr.rel (0) target = $region41
    $region40: #{tpu_custom_call.1} parent=1 // pred_region
      %55 = dma.done [#allocation3], 128
    $region41: #{tpu_custom_call.1} parent=1 // pred_fallthru
      _
    // Predicated region
    $region42: #{tpu_custom_call.1} parent=1 // pred_check
      _
    $region43: #{tpu_custom_call.1} parent=1 // pred_check_branch
      %57 = sbr.rel (0) target = $region45
    $region44: #{tpu_custom_call.1} parent=1 // pred_region
      %58 = dma.done [#allocation6], 2048
    $region45: #{tpu_custom_call.1} parent=1 // pred_fallthru
      _
    %v59 = vld [vmem:[#allocation2] sm:$0xff]
    %v60 = vld [vmem:[%s1] sm:$0xff]
    %v61 = vld [vmem:[%s1 + $0x8] sm:$0xff]
    %v62 = vld [vmem:[%s1 + $0x10] sm:$0xff]
    %v63 = vld [vmem:[%s1 + $0x18] sm:$0xff]
    %v64 = vld [vmem:[%s1 + $0x20] sm:$0xff]
    %v65 = vld [vmem:[%s1 + $0x28] sm:$0xff]
    %v66 = vld [vmem:[%s1 + $0x30] sm:$0xff]
    %v67 = vld [vmem:[%s1 + $0x38] sm:$0xff]
    %v68 = vld [vmem:[%s1 + $0x40] sm:$0xff]
    %v69 = vld [vmem:[%s1 + $0x48] sm:$0xff]
    %v70 = vld [vmem:[%s1 + $0x50] sm:$0xff]
    %v71 = vld [vmem:[%s1 + $0x58] sm:$0xff]
    %v72 = vld [vmem:[%s1 + $0x60] sm:$0xff]
    %v73 = vld [vmem:[%s1 + $0x68] sm:$0xff]
    %v74 = vld [vmem:[%s1 + $0x70] sm:$0xff]
    %v75 = vld [vmem:[%s1 + $0x78] sm:$0xff]
    %v76 = vld [vmem:[%s2] sm:$0x1]
    %v78 = vlaneseq
    %v79 = vshrl.u32 %v78, 7
    %v80 = vsub.s32 0, %v79
    %v81 = vrot.slane %v76, %v80
    %83 = vmatprep.subr.mxu0 0.0
    %84 = vmatpush1.msra.mxu0 %v75
    %85 = vmatprep.subr.mxu0 0.0
    %86 = vmatpush1.msra.mxu0 %v74
    %87 = vmatprep.subr.mxu0 0.0
    %88 = vmatpush1.msra.mxu0 %v73
    %89 = vmatprep.subr.mxu0 0.0
    %90 = vmatpush1.msra.mxu0 %v72
    %91 = vmatprep.subr.mxu0 0.0
    %92 = vmatpush1.msra.mxu0 %v71
    %93 = vmatprep.subr.mxu0 0.0
    %94 = vmatpush1.msra.mxu0 %v70
    %95 = vmatprep.subr.mxu0 0.0
    %96 = vmatpush1.msra.mxu0 %v69
    %97 = vmatprep.subr.mxu0 0.0
    %98 = vmatpush1.msra.mxu0 %v68
    %99 = vmatprep.subr.mxu0 0.0
    %100 = vmatpush1.msra.mxu0 %v67
    %101 = vmatprep.subr.mxu0 0.0
    %102 = vmatpush1.msra.mxu0 %v66
    %103 = vmatprep.subr.mxu0 0.0
    %104 = vmatpush1.msra.mxu0 %v65
    %105 = vmatprep.subr.mxu0 0.0
    %106 = vmatpush1.msra.mxu0 %v64
    %107 = vmatprep.subr.mxu0 0.0
    %108 = vmatpush1.msra.mxu0 %v63
    %109 = vmatprep.subr.mxu0 0.0
    %110 = vmatpush1.msra.mxu0 %v62
    %111 = vmatprep.subr.mxu0 0.0
    %112 = vmatpush1.msra.mxu0 %v61
    %113 = vmatprep.subr.mxu0 0.0
    %114 = vmatpush1.msra.mxu0 %v60
    %115 = vmatprep.subr.mxu0 0.0
    %116 = vmatpush2.msra.mxu0 0.0
    %117 = vmatprep.subr.mxu0 0.0
    %118 = vmatpush2.msra.mxu0 0.0
    %119 = vmatprep.subr.mxu0 0.0
    %120 = vmatpush2.msra.mxu0 0.0
    %121 = vmatprep.subr.mxu0 0.0
    %122 = vmatpush2.msra.mxu0 0.0
    %123 = vmatprep.subr.mxu0 0.0
    %124 = vmatpush2.msra.mxu0 0.0
    %125 = vmatprep.subr.mxu0 0.0
    %126 = vmatpush2.msra.mxu0 0.0
    %127 = vmatprep.subr.mxu0 0.0
    %128 = vmatpush2.msra.mxu0 0.0
    %129 = vmatprep.subr.mxu0 0.0
    %130 = vmatpush2.msra.mxu0 0.0
    %131 = vmatprep.subr.mxu0 0.0
    %132 = vmatpush2.msra.mxu0 0.0
    %133 = vmatprep.subr.mxu0 0.0
    %134 = vmatpush2.msra.mxu0 0.0
    %135 = vmatprep.subr.mxu0 0.0
    %136 = vmatpush2.msra.mxu0 0.0
    %137 = vmatprep.subr.mxu0 0.0
    %138 = vmatpush2.msra.mxu0 0.0
    %139 = vmatprep.subr.mxu0 0.0
    %140 = vmatpush2.msra.mxu0 0.0
    %141 = vmatprep.subr.mxu0 0.0
    %142 = vmatpush2.msra.mxu0 0.0
    %143 = vmatprep.subr.mxu0 0.0
    %144 = vmatpush2.msra.mxu0 0.0
    %145 = vmatprep.subr.mxu0 0.0
    %146 = vmatpush2.msra.mxu0 0.0
    %147 = vmatprep.mubr.f32.mxu0 0.0
    %148 = vmatmul.mubr.f32.gmra.mxu0 %v59
    %v149 = vpop.f32.mrf.mxu0
    %v150 = vadd.f32 %v81, %v149
    %v151 = vpop.f32.mrf.mxu0
    %152 = vdwg.mxu0
    %v153 = vmul.f32 %v150, 0.01
    %v154 = vmax.f32 %v150, %v153
    %v155 = vld [vmem:[#allocation5] sm:$0xff]
    %v156 = vld [vmem:[#allocation5 + $0x8] sm:$0xff]
    %v157 = vld [vmem:[#allocation5 + $0x10] sm:$0xff]
    %v158 = vld [vmem:[#allocation5 + $0x18] sm:$0xff]
    %v159 = vld [vmem:[#allocation5 + $0x20] sm:$0xff]
    %v160 = vld [vmem:[#allocation5 + $0x28] sm:$0xff]
    %v161 = vld [vmem:[#allocation5 + $0x30] sm:$0xff]
    %v162 = vld [vmem:[#allocation5 + $0x38] sm:$0xff]
    %v163 = vld [vmem:[#allocation5 + $0x40] sm:$0xff]
    %v164 = vld [vmem:[#allocation5 + $0x48] sm:$0xff]
    %v165 = vld [vmem:[#allocation5 + $0x50] sm:$0xff]
    %v166 = vld [vmem:[#allocation5 + $0x58] sm:$0xff]
    %v167 = vld [vmem:[#allocation5 + $0x60] sm:$0xff]
    %v168 = vld [vmem:[#allocation5 + $0x68] sm:$0xff]
    %v169 = vld [vmem:[#allocation5 + $0x70] sm:$0xff]
    %v170 = vld [vmem:[#allocation5 + $0x78] sm:$0xff]
    %v171 = vld [vmem:[%s4] sm:$0x1]
    %v173 = vlaneseq
    %v174 = vshrl.u32 %v173, 7
    %v175 = vsub.s32 0, %v174
    %v176 = vrot.slane %v171, %v175
    %178 = vmatprep.subr.mxu0 0.0
    %179 = vmatpush1.msra.mxu0 %v170
    %180 = vmatprep.subr.mxu0 0.0
    %181 = vmatpush1.msra.mxu0 %v169
    %182 = vmatprep.subr.mxu0 0.0
    %183 = vmatpush1.msra.mxu0 %v168
    %184 = vmatprep.subr.mxu0 0.0
    %185 = vmatpush1.msra.mxu0 %v167
    %186 = vmatprep.subr.mxu0 0.0
    %187 = vmatpush1.msra.mxu0 %v166
    %188 = vmatprep.subr.mxu0 0.0
    %189 = vmatpush1.msra.mxu0 %v165
    %190 = vmatprep.subr.mxu0 0.0
    %191 = vmatpush1.msra.mxu0 %v164
    %192 = vmatprep.subr.mxu0 0.0
    %193 = vmatpush1.msra.mxu0 %v163
    %194 = vmatprep.subr.mxu0 0.0
    %195 = vmatpush1.msra.mxu0 %v162
    %196 = vmatprep.subr.mxu0 0.0
    %197 = vmatpush1.msra.mxu0 %v161
    %198 = vmatprep.subr.mxu0 0.0
    %199 = vmatpush1.msra.mxu0 %v160
    %200 = vmatprep.subr.mxu0 0.0
    %201 = vmatpush1.msra.mxu0 %v159
    %202 = vmatprep.subr.mxu0 0.0
    %203 = vmatpush1.msra.mxu0 %v158
    %204 = vmatprep.subr.mxu0 0.0
    %205 = vmatpush1.msra.mxu0 %v157
    %206 = vmatprep.subr.mxu0 0.0
    %207 = vmatpush1.msra.mxu0 %v156
    %208 = vmatprep.subr.mxu0 0.0
    %209 = vmatpush1.msra.mxu0 %v155
    %210 = vmatprep.subr.mxu0 0.0
    %211 = vmatpush2.msra.mxu0 0.0
    %212 = vmatprep.subr.mxu0 0.0
    %213 = vmatpush2.msra.mxu0 0.0
    %214 = vmatprep.subr.mxu0 0.0
    %215 = vmatpush2.msra.mxu0 0.0
    %216 = vmatprep.subr.mxu0 0.0
    %217 = vmatpush2.msra.mxu0 0.0
    %218 = vmatprep.subr.mxu0 0.0
    %219 = vmatpush2.msra.mxu0 0.0
    %220 = vmatprep.subr.mxu0 0.0
    %221 = vmatpush2.msra.mxu0 0.0
    %222 = vmatprep.subr.mxu0 0.0
    %223 = vmatpush2.msra.mxu0 0.0
    %224 = vmatprep.subr.mxu0 0.0
    %225 = vmatpush2.msra.mxu0 0.0
    %226 = vmatprep.subr.mxu0 0.0
    %227 = vmatpush2.msra.mxu0 0.0
    %228 = vmatprep.subr.mxu0 0.0
    %229 = vmatpush2.msra.mxu0 0.0
    %230 = vmatprep.subr.mxu0 0.0
    %231 = vmatpush2.msra.mxu0 0.0
    %232 = vmatprep.subr.mxu0 0.0
    %233 = vmatpush2.msra.mxu0 0.0
    %234 = vmatprep.subr.mxu0 0.0
    %235 = vmatpush2.msra.mxu0 0.0
    %236 = vmatprep.subr.mxu0 0.0
    %237 = vmatpush2.msra.mxu0 0.0
    %238 = vmatprep.subr.mxu0 0.0
    %239 = vmatpush2.msra.mxu0 0.0
    %240 = vmatprep.subr.mxu0 0.0
    %241 = vmatpush2.msra.mxu0 0.0
    %242 = vmatprep.mubr.f32.mxu0 0.0
    %243 = vmatmul.mubr.f32.gmra.mxu0 %v154
    %v244 = vpop.f32.mrf.mxu0
    %v245 = vadd.f32 %v176, %v244
    %v246 = vpop.f32.mrf.mxu0
    %247 = vdwg.mxu0
    %v248 = vmul.f32 %v245, 0.01
    %v249 = vmax.f32 %v245, %v248
    %v250 = vld [vmem:[%s5] sm:$0xff]
    %v251 = vld [vmem:[%s5 + $0x8] sm:$0xff]
    %v252 = vld [vmem:[%s5 + $0x10] sm:$0xff]
    %v253 = vld [vmem:[%s5 + $0x18] sm:$0xff]
    %v254 = vld [vmem:[%s5 + $0x20] sm:$0xff]
    %v255 = vld [vmem:[%s5 + $0x28] sm:$0xff]
    %v256 = vld [vmem:[%s5 + $0x30] sm:$0xff]
    %v257 = vld [vmem:[%s5 + $0x38] sm:$0xff]
    %v258 = vld [vmem:[%s5 + $0x40] sm:$0xff]
    %v259 = vld [vmem:[%s5 + $0x48] sm:$0xff]
    %v260 = vld [vmem:[%s5 + $0x50] sm:$0xff]
    %v261 = vld [vmem:[%s5 + $0x58] sm:$0xff]
    %v262 = vld [vmem:[%s5 + $0x60] sm:$0xff]
    %v263 = vld [vmem:[%s5 + $0x68] sm:$0xff]
    %v264 = vld [vmem:[%s5 + $0x70] sm:$0xff]
    %v265 = vld [vmem:[%s5 + $0x78] sm:$0xff]
    %v266 = vld [vmem:[%s6] sm:$0x1]
    %v268 = vlaneseq
    %v269 = vshrl.u32 %v268, 7
    %v270 = vsub.s32 0, %v269
    %v271 = vrot.slane %v266, %v270
    %273 = vmatprep.subr.mxu0 0.0
    %274 = vmatpush1.msra.mxu0 %v265
    %275 = vmatprep.subr.mxu0 0.0
    %276 = vmatpush1.msra.mxu0 %v264
    %277 = vmatprep.subr.mxu0 0.0
    %278 = vmatpush1.msra.mxu0 %v263
    %279 = vmatprep.subr.mxu0 0.0
    %280 = vmatpush1.msra.mxu0 %v262
    %281 = vmatprep.subr.mxu0 0.0
    %282 = vmatpush1.msra.mxu0 %v261
    %283 = vmatprep.subr.mxu0 0.0
    %284 = vmatpush1.msra.mxu0 %v260
    %285 = vmatprep.subr.mxu0 0.0
    %286 = vmatpush1.msra.mxu0 %v259
    %287 = vmatprep.subr.mxu0 0.0
    %288 = vmatpush1.msra.mxu0 %v258
    %289 = vmatprep.subr.mxu0 0.0
    %290 = vmatpush1.msra.mxu0 %v257
    %291 = vmatprep.subr.mxu0 0.0
    %292 = vmatpush1.msra.mxu0 %v256
    %293 = vmatprep.subr.mxu0 0.0
    %294 = vmatpush1.msra.mxu0 %v255
    %295 = vmatprep.subr.mxu0 0.0
    %296 = vmatpush1.msra.mxu0 %v254
    %297 = vmatprep.subr.mxu0 0.0
    %298 = vmatpush1.msra.mxu0 %v253
    %299 = vmatprep.subr.mxu0 0.0
    %300 = vmatpush1.msra.mxu0 %v252
    %301 = vmatprep.subr.mxu0 0.0
    %302 = vmatpush1.msra.mxu0 %v251
    %303 = vmatprep.subr.mxu0 0.0
    %304 = vmatpush1.msra.mxu0 %v250
    %305 = vmatprep.subr.mxu0 0.0
    %306 = vmatpush2.msra.mxu0 0.0
    %307 = vmatprep.subr.mxu0 0.0
    %308 = vmatpush2.msra.mxu0 0.0
    %309 = vmatprep.subr.mxu0 0.0
    %310 = vmatpush2.msra.mxu0 0.0
    %311 = vmatprep.subr.mxu0 0.0
    %312 = vmatpush2.msra.mxu0 0.0
    %313 = vmatprep.subr.mxu0 0.0
    %314 = vmatpush2.msra.mxu0 0.0
    %315 = vmatprep.subr.mxu0 0.0
    %316 = vmatpush2.msra.mxu0 0.0
    %317 = vmatprep.subr.mxu0 0.0
    %318 = vmatpush2.msra.mxu0 0.0
    %319 = vmatprep.subr.mxu0 0.0
    %320 = vmatpush2.msra.mxu0 0.0
    %321 = vmatprep.subr.mxu0 0.0
    %322 = vmatpush2.msra.mxu0 0.0
    %323 = vmatprep.subr.mxu0 0.0
    %324 = vmatpush2.msra.mxu0 0.0
    %325 = vmatprep.subr.mxu0 0.0
    %326 = vmatpush2.msra.mxu0 0.0
    %327 = vmatprep.subr.mxu0 0.0
    %328 = vmatpush2.msra.mxu0 0.0
    %329 = vmatprep.subr.mxu0 0.0
    %330 = vmatpush2.msra.mxu0 0.0
    %331 = vmatprep.subr.mxu0 0.0
    %332 = vmatpush2.msra.mxu0 0.0
    %333 = vmatprep.subr.mxu0 0.0
    %334 = vmatpush2.msra.mxu0 0.0
    %335 = vmatprep.subr.mxu0 0.0
    %336 = vmatpush2.msra.mxu0 0.0
    %337 = vmatprep.mubr.f32.mxu0 0.0
    %338 = vmatmul.mubr.f32.gmra.mxu0 %v249
    %v339 = vpop.f32.mrf.mxu0
    %v340 = vadd.f32 %v271, %v339
    %v341 = vpop.f32.mrf.mxu0
    %342 = vdwg.mxu0
    %v343 = vmul.f32 %v340, 0.01
    %v344 = vmax.f32 %v340, %v343
    %v345 = vld [vmem:[%s7] sm:$0xff]
    %v346 = vld [vmem:[%s7 + $0x8] sm:$0xff]
    %v347 = vld [vmem:[%s7 + $0x10] sm:$0xff]
    %v348 = vld [vmem:[%s7 + $0x18] sm:$0xff]
    %v349 = vld [vmem:[%s7 + $0x20] sm:$0xff]
    %v350 = vld [vmem:[%s7 + $0x28] sm:$0xff]
    %v351 = vld [vmem:[%s7 + $0x30] sm:$0xff]
    %v352 = vld [vmem:[%s7 + $0x38] sm:$0xff]
    %v353 = vld [vmem:[%s8] sm:$0x1]
    %v355 = vlaneseq
    %v356 = vshrl.u32 %v355, 7
    %v357 = vsub.s32 0, %v356
    %v358 = vrot.slane %v353, %v357
    %vm360 = vcmask 523264
    %v362 = vsel %vm360, %v344, 0
    %364 = vmatprep.subr.mxu0 0.0
    %365 = vmatpush1.msra.mxu0 0.0
    %366 = vmatprep.subr.mxu0 0.0
    %367 = vmatpush1.msra.mxu0 0.0
    %368 = vmatprep.subr.mxu0 0.0
    %369 = vmatpush1.msra.mxu0 0.0
    %370 = vmatprep.subr.mxu0 0.0
    %371 = vmatpush1.msra.mxu0 0.0
    %372 = vmatprep.subr.mxu0 0.0
    %373 = vmatpush1.msra.mxu0 0.0
    %374 = vmatprep.subr.mxu0 0.0
    %375 = vmatpush1.msra.mxu0 0.0
    %376 = vmatprep.subr.mxu0 0.0
    %377 = vmatpush1.msra.mxu0 0.0
    %378 = vmatprep.subr.mxu0 0.0
    %379 = vmatpush1.msra.mxu0 0.0
    %380 = vmatprep.subr.mxu0 0.0
    %381 = vmatpush1.msra.mxu0 %v352
    %382 = vmatprep.subr.mxu0 0.0
    %383 = vmatpush1.msra.mxu0 %v351
    %384 = vmatprep.subr.mxu0 0.0
    %385 = vmatpush1.msra.mxu0 %v350
    %386 = vmatprep.subr.mxu0 0.0
    %387 = vmatpush1.msra.mxu0 %v349
    %388 = vmatprep.subr.mxu0 0.0
    %389 = vmatpush1.msra.mxu0 %v348
    %390 = vmatprep.subr.mxu0 0.0
    %391 = vmatpush1.msra.mxu0 %v347
    %392 = vmatprep.subr.mxu0 0.0
    %393 = vmatpush1.msra.mxu0 %v346
    %394 = vmatprep.subr.mxu0 0.0
    %395 = vmatpush1.msra.mxu0 %v345
    %396 = vmatprep.subr.mxu0 0.0
    %397 = vmatpush2.msra.mxu0 0.0
    %398 = vmatprep.subr.mxu0 0.0
    %399 = vmatpush2.msra.mxu0 0.0
    %400 = vmatprep.subr.mxu0 0.0
    %401 = vmatpush2.msra.mxu0 0.0
    %402 = vmatprep.subr.mxu0 0.0
    %403 = vmatpush2.msra.mxu0 0.0
    %404 = vmatprep.subr.mxu0 0.0
    %405 = vmatpush2.msra.mxu0 0.0
    %406 = vmatprep.subr.mxu0 0.0
    %407 = vmatpush2.msra.mxu0 0.0
    %408 = vmatprep.subr.mxu0 0.0
    %409 = vmatpush2.msra.mxu0 0.0
    %410 = vmatprep.subr.mxu0 0.0
    %411 = vmatpush2.msra.mxu0 0.0
    %412 = vmatprep.subr.mxu0 0.0
    %413 = vmatpush2.msra.mxu0 0.0
    %414 = vmatprep.subr.mxu0 0.0
    %415 = vmatpush2.msra.mxu0 0.0
    %416 = vmatprep.subr.mxu0 0.0
    %417 = vmatpush2.msra.mxu0 0.0
    %418 = vmatprep.subr.mxu0 0.0
    %419 = vmatpush2.msra.mxu0 0.0
    %420 = vmatprep.subr.mxu0 0.0
    %421 = vmatpush2.msra.mxu0 0.0
    %422 = vmatprep.subr.mxu0 0.0
    %423 = vmatpush2.msra.mxu0 0.0
    %424 = vmatprep.subr.mxu0 0.0
    %425 = vmatpush2.msra.mxu0 0.0
    %426 = vmatprep.subr.mxu0 0.0
    %427 = vmatpush2.msra.mxu0 0.0
    %428 = vmatprep.mubr.f32.mxu0 0.0
    %429 = vmatmul.mubr.f32.gmra.mxu0 %v362
    %v430 = vpop.f32.mrf.mxu0
    %v431 = vadd.f32 %v358, %v430
    %v432 = vpop.f32.mrf.mxu0
    %433 = vdwg.mxu0
    %v434 = vlaneseq
    %v435 = vand.u32 %v434, 127
    %v436 = vmax.f32 %v431, -20.0
    %v437 = vmin.f32 %v436, 2.0
    %vm438 = vcmp.ge.s32.totalorder %v435, 2
    %v439 = vsel %vm438, %v437, %v431
    %440 = vst [vmem:[#allocation7] sm:$0xff] %v439
    // Predicated region
    $region46: #{tpu_custom_call.1} parent=1 // pred_check
      _
    $region47: #{tpu_custom_call.1} parent=1 // pred_check_branch
      %442 = sbr.rel (0) target = $region49
    $region48: #{tpu_custom_call.1} parent=1 // pred_region
      %s444 = ssub.s32 128, 128
      %445 = vsyncadd [#allocation4], %s444
      %s447 = sshll.u32 [#allocation7], 4
      %s448 = int_to_ptr.vmem [resolvable:$true] %s447
      %450 = dma.vmem_to_hbm [thread:$0]  %s448, 128, %s9, [#allocation4]
    $region49: #{tpu_custom_call.1} parent=1 // pred_fallthru
      _
    // Predicated region
    $region50: #{tpu_custom_call.1} parent=1 // pred_check
      _
    $region51: #{tpu_custom_call.1} parent=1 // pred_check_branch
      %452 = sbr.rel (0) target = $region53
    $region52: #{tpu_custom_call.1} parent=1 // pred_region
      %453 = dma.done [#allocation4], 128
    $region53: #{tpu_custom_call.1} parent=1 // pred_fallthru
      _
    %454 = vsyncpa [#allocation3], 1
    %455 = vsyncpa [#allocation6], 1
    %456 = vsyncpa [#allocation4], 1

</llo_original>
